<compile_context>
chip_gen: v5e
topology: v5e:2x2
jax: 0.10.0
libtpu: 0.0.40
codegen_flags: <defaults>
</compile_context>

<pallas_src>
import functools

import jax
import jax.numpy as jnp
from jax.experimental import pallas as pl
from jax.experimental.pallas import tpu as pltpu

NEG_SLOPE = 0.01   # F.leaky_relu default negative slope
LANE = 128         # TPU lane width (hidden-dim padding granularity)


def _ceil_to(n, m):
    return ((n + m - 1) // m) * m


def _leaky_relu(x):
    # max(x, 0.01*x) == leaky_relu(x, 0.01): one vmul + one vmax on the VPU.
    return jnp.maximum(x, NEG_SLOPE * x)


def unn_decoder_kernel(x_ref, w1_ref, b1_ref, w2_ref, b2_ref, w3_ref, b3_ref, o_ref):
    """Fused 3-layer MLP on one (b_tile, u_dim) batch tile.

    Weights are bf16 and VMEM-resident; matmuls accumulate in f32 on the MXU,
    bias-add / leaky_relu run in f32, output is stored in the input dtype.
    """
    x = x_ref[...].astype(w1_ref.dtype)

    h1 = jnp.dot(x, w1_ref[...], preferred_element_type=jnp.float32) + b1_ref[...]
    h1 = _leaky_relu(h1).astype(w2_ref.dtype)

    h2 = jnp.dot(h1, w2_ref[...], preferred_element_type=jnp.float32) + b2_ref[...]
    h2 = _leaky_relu(h2).astype(w3_ref.dtype)

    out = jnp.dot(h2, w3_ref[...], preferred_element_type=jnp.float32) + b3_ref[...]
    o_ref[...] = out.astype(o_ref.dtype)


@functools.partial(jax.jit, static_argnames=("b_tile",))
def _forward_tiled(x, w1, b1, w2, b2, w3, b3, *, b_tile):
    """x: (B, u_dim) with B % b_tile == 0. Params already in kernel layout."""
    B, u_dim = x.shape
    grid = (B // b_tile,)

    return pl.pallas_call(
        unn_decoder_kernel,
        out_shape=jax.ShapeDtypeStruct((B, u_dim), x.dtype),
        grid=grid,
        in_specs=[
            # x streams along the batch axis; last block dim == full (unpadded) u_dim.
            pl.BlockSpec((b_tile, u_dim), lambda i: (i, 0)),
            # Weights / biases: constant block index -> DMA'd once, VMEM-resident.
            pl.BlockSpec(w1.shape, lambda i: (0, 0)),
            pl.BlockSpec(b1.shape, lambda i: (0, 0)),
            pl.BlockSpec(w2.shape, lambda i: (0, 0)),
            pl.BlockSpec(b2.shape, lambda i: (0, 0)),
            pl.BlockSpec(w3.shape, lambda i: (0, 0)),
            pl.BlockSpec(b3.shape, lambda i: (0, 0)),
        ],
        # Output written directly at the unpadded (B, u_dim) shape -> no wrapper slice.
        out_specs=pl.BlockSpec((b_tile, u_dim), lambda i: (i, 0)),
        compiler_params=pltpu.CompilerParams(
            dimension_semantics=("parallel",),
        ),
    )(x, w1, b1, w2, b2, w3, b3)


def unn_decoder_forward(x, kernel_params, *, max_b_tile=2048):
    """Forward pass matching PyTorch UnnDecoder. kernel_params from to_kernel_params()."""
    w1, b1, w2, b2, w3, b3 = kernel_params
    B, _ = x.shape

    # Largest batch tile up to the cap: fewer, bigger grid steps (per-step overhead and
    # DMA setup dominate this tiny MLP). Cap is a multiple of 256 (v6e/v7x MXU rows) and
    # every tile is a multiple of 8 sublanes.
    b_tile = min(_ceil_to(B, 8), max_b_tile)
    B_pad = _ceil_to(B, b_tile)

    x_p = x if B_pad == B else jnp.pad(x, ((0, B_pad - B), (0, 0)))
    out = _forward_tiled(x_p, w1, b1, w2, b2, w3, b3, b_tile=b_tile)
    return out if B_pad == B else out[:B]


# ---------------- parameter construction (matches PyTorch UnnDecoder) ----------------

def kaiming_uniform(key, shape):
    # nn.init.kaiming_uniform_ defaults: a=0 -> gain=sqrt(2), bound = gain*sqrt(3/fan_in)
    fan_in = shape[1]
    bound = jnp.sqrt(2.0) * jnp.sqrt(3.0 / fan_in)
    return jax.random.uniform(key, shape, jnp.float32, -bound, bound)


def linear_bias_init(key, fan_in, out_features):
    # nn.Linear default bias init: U(-1/sqrt(fan_in), 1/sqrt(fan_in))
    bound = 1.0 / jnp.sqrt(fan_in)
    return jax.random.uniform(key, (1, out_features), jnp.float32, -bound, bound)


def make_params(key, u_dim, u_rom):
    hidden = (u_dim + u_rom) // 2
    k = jax.random.split(key, 6)
    # PyTorch Linear weight is (out, in); transpose so the kernel computes x @ w.
    w1 = kaiming_uniform(k[0], (hidden, u_dim))   # o1_u: u_dim -> hidden
    w2 = kaiming_uniform(k[1], (hidden, hidden))  # o2_u: hidden -> hidden
    w3 = kaiming_uniform(k[2], (u_dim, hidden))   # o3_u: hidden -> u_dim
    b1 = linear_bias_init(k[3], u_dim, hidden)
    b2 = linear_bias_init(k[4], hidden, hidden)
    b3 = linear_bias_init(k[5], hidden, u_dim)
    return (w1.T, b1, w2.T, b2, w3.T, b3)   # f32, unpadded, (in, out) layout


def to_kernel_params(params, lane=LANE, weight_dtype=jnp.bfloat16):
    """Kernel layout: hidden dim zero-padded to 128 lanes, u_dim left unpadded,
    weights cast to bf16 (MXU-native), biases kept f32 (added post-accumulation)."""
    w1, b1, w2, b2, w3, b3 = params
    u_dim, hidden = w1.shape
    # TODO(synk): feature dims > ~1024 would want a K-tiling grid axis + accumulator.
    assert u_dim <= 1024 and hidden <= 1024, "single-dot kernel assumes small feature dims"
    h_pad = _ceil_to(hidden, lane)
    dh = h_pad - hidden

    w1_k = jnp.pad(w1, ((0, 0), (0, dh))).astype(weight_dtype)        # (u_dim, h_pad)
    b1_k = jnp.pad(b1, ((0, 0), (0, dh)))                             # (1, h_pad) f32
    w2_k = jnp.pad(w2, ((0, dh), (0, dh))).astype(weight_dtype)       # (h_pad, h_pad)
    b2_k = jnp.pad(b2, ((0, 0), (0, dh)))                             # (1, h_pad) f32
    w3_k = jnp.pad(w3, ((0, dh), (0, 0))).astype(weight_dtype)        # (h_pad, u_dim)
    b3_k = b3                                                         # (1, u_dim) f32
    return (w1_k, b1_k, w2_k, b2_k, w3_k, b3_k)


# ---------------- references ----------------

def reference_forward_f32(x, params):
    w1, b1, w2, b2, w3, b3 = params
    h1 = jax.nn.leaky_relu(x @ w1 + b1, NEG_SLOPE)
    h2 = jax.nn.leaky_relu(h1 @ w2 + b2, NEG_SLOPE)
    return h2 @ w3 + b3


def reference_forward_kernel_precision(x, kparams):
    # Mirrors the kernel numerics: bf16 weights/activations, f32 accumulation.
    w1, b1, w2, b2, w3, b3 = kparams
    xb = x.astype(w1.dtype)
    h1 = jnp.dot(xb, w1, preferred_element_type=jnp.float32) + b1
    h1 = _leaky_relu(h1).astype(w2.dtype)
    h2 = jnp.dot(h1, w2, preferred_element_type=jnp.float32) + b2
    h2 = _leaky_relu(h2).astype(w3.dtype)
    return jnp.dot(h2, w3, preferred_element_type=jnp.float32) + b3


if __name__ == "__main__":
    key = jax.random.PRNGKey(0)
    u_dim, u_rom = 32, 16          # hidden = 24
    batch = 256                    # one 256-row tile -> grid=(1,), no pad / no slice
    kx, kp = jax.random.split(key)

    x = jax.random.normal(kx, (batch, u_dim), jnp.float32)
    params = make_params(kp, u_dim, u_rom)          # f32, PyTorch-equivalent
    kparams = to_kernel_params(params)              # bf16 weights, lane-padded hidden dim

    out = unn_decoder_forward(x, kparams)
    out = jax.block_until_ready(out)
    assert out.shape == (batch, u_dim), out.shape

    # Tight check vs a pure-JAX reference with identical bf16-weight / f32-acc numerics.
    ref_bf16 = reference_forward_kernel_precision(x, kparams)
    assert jnp.allclose(out, ref_bf16, atol=2e-3, rtol=2e-3), "mismatch vs bf16 reference"

    # Loose check vs the full-f32 PyTorch-equivalent forward (bf16 weight rounding only).
    ref_f32 = reference_forward_f32(x, params)
    assert jnp.allclose(out, ref_f32, atol=1e-1, rtol=1e-1), "mismatch vs f32 reference"

    print("KERNEL_OK")
</pallas_src>

<mosaic_0001>
module attributes {stable_mosaic.version = 11 : i64} {
  func.func @unn_decoder_kernel(%arg0: i32, %arg1: memref<256x32xf32, #tpu.memory_space<vmem>>, %arg2: memref<32x128xbf16, #tpu.memory_space<vmem>>, %arg3: memref<1x128xf32, #tpu.memory_space<vmem>>, %arg4: memref<128x128xbf16, #tpu.memory_space<vmem>>, %arg5: memref<1x128xf32, #tpu.memory_space<vmem>>, %arg6: memref<128x32xbf16, #tpu.memory_space<vmem>>, %arg7: memref<1x32xf32, #tpu.memory_space<vmem>>, %arg8: memref<256x32xf32, #tpu.memory_space<vmem>>) attributes {dimension_semantics = [#tpu.dimension_semantics<parallel>], iteration_bounds = array<i64: 1>, scalar_prefetch = 0 : i64, scratch_operands = 0 : i64, tpu.core_type = #tpu.core_type<tc>, window_params = [{transform_indices = @transform_0, window_bounds = array<i64: 256, 32>}, {pipeline_mode = #tpu.pipeline_mode<synchronous>, transform_indices = @transform_1, window_bounds = array<i64: 32, 128>}, {pipeline_mode = #tpu.pipeline_mode<synchronous>, transform_indices = @transform_2, window_bounds = array<i64: 1, 128>}, {pipeline_mode = #tpu.pipeline_mode<synchronous>, transform_indices = @transform_3, window_bounds = array<i64: 128, 128>}, {pipeline_mode = #tpu.pipeline_mode<synchronous>, transform_indices = @transform_4, window_bounds = array<i64: 1, 128>}, {pipeline_mode = #tpu.pipeline_mode<synchronous>, transform_indices = @transform_5, window_bounds = array<i64: 128, 32>}, {pipeline_mode = #tpu.pipeline_mode<synchronous>, transform_indices = @transform_6, window_bounds = array<i64: 1, 32>}, {transform_indices = @transform_7, window_bounds = array<i64: 256, 32>}]} {
    %c0 = arith.constant 0 : index
    %c0_0 = arith.constant 0 : index
    %0 = vector.load %arg1[%c0, %c0_0] : memref<256x32xf32, #tpu.memory_space<vmem>>, vector<256x32xf32>
    %1 = arith.truncf %0 : vector<256x32xf32> to vector<256x32xbf16>
    %c0_1 = arith.constant 0 : index
    %c0_2 = arith.constant 0 : index
    %2 = vector.load %arg2[%c0_1, %c0_2] : memref<32x128xbf16, #tpu.memory_space<vmem>>, vector<32x128xbf16>
    %cst = arith.constant dense<0.000000e+00> : vector<256x128xf32>
    %3 = tpu.matmul %1, %2, %cst {dimension_numbers = #tpu.dot_dimension_numbers<[1], [0], [0], [1], [0, 0, 1, 1], [], []>} : vector<256x32xbf16>, vector<32x128xbf16>, vector<256x128xf32> -> vector<256x128xf32>
    %c0_3 = arith.constant 0 : index
    %c0_4 = arith.constant 0 : index
    %4 = vector.load %arg3[%c0_3, %c0_4] : memref<1x128xf32, #tpu.memory_space<vmem>>, vector<1x128xf32>
    %5 = vector.broadcast %4 : vector<1x128xf32> to vector<256x128xf32>
    %6 = arith.addf %3, %5 : vector<256x128xf32>
    %cst_5 = arith.constant 0.00999999977 : f32
    %7 = vector.broadcast %cst_5 : f32 to vector<256x128xf32>
    %8 = arith.mulf %7, %6 : vector<256x128xf32>
    %9 = arith.maximumf %6, %8 : vector<256x128xf32>
    %10 = arith.truncf %9 : vector<256x128xf32> to vector<256x128xbf16>
    %c0_6 = arith.constant 0 : index
    %c0_7 = arith.constant 0 : index
    %11 = vector.load %arg4[%c0_6, %c0_7] : memref<128x128xbf16, #tpu.memory_space<vmem>>, vector<128x128xbf16>
    %cst_8 = arith.constant dense<0.000000e+00> : vector<256x128xf32>
    %12 = tpu.matmul %10, %11, %cst_8 {dimension_numbers = #tpu.dot_dimension_numbers<[1], [0], [0], [1], [0, 0, 1, 1], [], []>} : vector<256x128xbf16>, vector<128x128xbf16>, vector<256x128xf32> -> vector<256x128xf32>
    %c0_9 = arith.constant 0 : index
    %c0_10 = arith.constant 0 : index
    %13 = vector.load %arg5[%c0_9, %c0_10] : memref<1x128xf32, #tpu.memory_space<vmem>>, vector<1x128xf32>
    %14 = vector.broadcast %13 : vector<1x128xf32> to vector<256x128xf32>
    %15 = arith.addf %12, %14 : vector<256x128xf32>
    %cst_11 = arith.constant 0.00999999977 : f32
    %16 = vector.broadcast %cst_11 : f32 to vector<256x128xf32>
    %17 = arith.mulf %16, %15 : vector<256x128xf32>
    %18 = arith.maximumf %15, %17 : vector<256x128xf32>
    %19 = arith.truncf %18 : vector<256x128xf32> to vector<256x128xbf16>
    %c0_12 = arith.constant 0 : index
    %c0_13 = arith.constant 0 : index
    %20 = vector.load %arg6[%c0_12, %c0_13] : memref<128x32xbf16, #tpu.memory_space<vmem>>, vector<128x32xbf16>
    %cst_14 = arith.constant dense<0.000000e+00> : vector<256x32xf32>
    %21 = tpu.matmul %19, %20, %cst_14 {dimension_numbers = #tpu.dot_dimension_numbers<[1], [0], [0], [1], [0, 0, 1, 1], [], []>} : vector<256x128xbf16>, vector<128x32xbf16>, vector<256x32xf32> -> vector<256x32xf32>
    %c0_15 = arith.constant 0 : index
    %c0_16 = arith.constant 0 : index
    %22 = vector.load %arg7[%c0_15, %c0_16] : memref<1x32xf32, #tpu.memory_space<vmem>>, vector<1x32xf32>
    %23 = vector.broadcast %22 : vector<1x32xf32> to vector<256x32xf32>
    %24 = arith.addf %21, %23 : vector<256x32xf32>
    %c0_17 = arith.constant 0 : index
    %c0_18 = arith.constant 0 : index
    %25 = vector.load %arg8[%c0_17, %c0_18] : memref<256x32xf32, #tpu.memory_space<vmem>>, vector<256x32xf32>
    tpu.vector_store %arg8[%c0_17, %c0_18], %24 {strides = array<i32>} : memref<256x32xf32, #tpu.memory_space<vmem>>, vector<256x32xf32>,
    return
  }
  func.func @transform_0(%arg0: i32) -> (i32, i32) {
    %c0_i32 = arith.constant 0 : i32
    %c0_i32_0 = arith.constant 0 : i32
    return %arg0, %c0_i32 : i32, i32
  }
  func.func @transform_1(%arg0: i32) -> (i32, i32) {
    %c0_i32 = arith.constant 0 : i32
    %c0_i32_0 = arith.constant 0 : i32
    %c0_i32_1 = arith.constant 0 : i32
    return %c0_i32, %c0_i32_0 : i32, i32
  }
  func.func @transform_2(%arg0: i32) -> (i32, i32) {
    %c0_i32 = arith.constant 0 : i32
    %c0_i32_0 = arith.constant 0 : i32
    %c0_i32_1 = arith.constant 0 : i32
    return %c0_i32, %c0_i32_0 : i32, i32
  }
  func.func @transform_3(%arg0: i32) -> (i32, i32) {
    %c0_i32 = arith.constant 0 : i32
    %c0_i32_0 = arith.constant 0 : i32
    %c0_i32_1 = arith.constant 0 : i32
    return %c0_i32, %c0_i32_0 : i32, i32
  }
  func.func @transform_4(%arg0: i32) -> (i32, i32) {
    %c0_i32 = arith.constant 0 : i32
    %c0_i32_0 = arith.constant 0 : i32
    %c0_i32_1 = arith.constant 0 : i32
    return %c0_i32, %c0_i32_0 : i32, i32
  }
  func.func @transform_5(%arg0: i32) -> (i32, i32) {
    %c0_i32 = arith.constant 0 : i32
    %c0_i32_0 = arith.constant 0 : i32
    %c0_i32_1 = arith.constant 0 : i32
    return %c0_i32, %c0_i32_0 : i32, i32
  }
  func.func @transform_6(%arg0: i32) -> (i32, i32) {
    %c0_i32 = arith.constant 0 : i32
    %c0_i32_0 = arith.constant 0 : i32
    %c0_i32_1 = arith.constant 0 : i32
    return %c0_i32, %c0_i32_0 : i32, i32
  }
  func.func @transform_7(%arg0: i32) -> (i32, i32) {
    %c0_i32 = arith.constant 0 : i32
    %c0_i32_0 = arith.constant 0 : i32
    return %arg0, %c0_i32 : i32, i32
  }
}

</mosaic_0001>

<llo_original>
// kernel: _forward_tiled.1
$region0: #{_forward_tiled.1}
  #allocation0 [shape = 'u32[]', space=smem, size = 0x4, offset = 0x4, fixed_abs, tag = 'smem constant byte address 0x4 - core index']
  #allocation1 [shape = 'u32[72,128]{1,0:T(1,128)}', space=vmem, size = 0x9000, scoped, tag = 'internal scratch']
  %s0 = inlined_call_operand.vmem [shape: f32[256,32], index: 0, kind: input, shape index: {}]
  %s1 = inlined_call_operand.vmem [shape: bf16[32,128], index: 1, kind: input, shape index: {}]
  %s2 = inlined_call_operand.vmem [shape: f32[1,128], index: 2, kind: input, shape index: {}]
  %s3 = inlined_call_operand.vmem [shape: bf16[128,128], index: 3, kind: input, shape index: {}]
  %s4 = inlined_call_operand.vmem [shape: f32[1,128], index: 4, kind: input, shape index: {}]
  %s5 = inlined_call_operand.vmem [shape: bf16[128,32], index: 5, kind: input, shape index: {}]
  %s6 = inlined_call_operand.vmem [shape: f32[1,32], index: 6, kind: input, shape index: {}]
  %s7 = inlined_call_operand.vmem [shape: f32[256,32], index: 7, kind: output, shape index: {}]
  %s8 = sld [smem:[#allocation0]]
  $region38: #{_forward_tiled.1} parent=0
    _
  %s10 = ssub.s32 1, %s8
  %s11 = scalar_select 0, %s10, %s8
  // Predicated region
  $region2: #{_forward_tiled.1} parent=0 // pred_check
    _
  $region3: #{_forward_tiled.1} parent=0 // pred_check_branch
    %13 = sbr.rel (0) target = $region5
  $region4: #{_forward_tiled.1} parent=0 // pred_region
    _
  $region5: #{_forward_tiled.1} parent=0 // pred_fallthru
    _
  // Predicated region
  $region6: #{_forward_tiled.1} parent=0 // pred_check
    _
  $region7: #{_forward_tiled.1} parent=0 // pred_check_branch
    %15 = sbr.rel (0) target = $region9
  $region8: #{_forward_tiled.1} parent=0 // pred_region
    _
  $region9: #{_forward_tiled.1} parent=0 // pred_fallthru
    _
  // Predicated region
  $region10: #{_forward_tiled.1} parent=0 // pred_check
    _
  $region11: #{_forward_tiled.1} parent=0 // pred_check_branch
    %17 = sbr.rel (0) target = $region13
  $region12: #{_forward_tiled.1} parent=0 // pred_region
    _
  $region13: #{_forward_tiled.1} parent=0 // pred_fallthru
    _
  // Predicated region
  $region14: #{_forward_tiled.1} parent=0 // pred_check
    _
  $region15: #{_forward_tiled.1} parent=0 // pred_check_branch
    %19 = sbr.rel (0) target = $region17
  $region16: #{_forward_tiled.1} parent=0 // pred_region
    _
  $region17: #{_forward_tiled.1} parent=0 // pred_fallthru
    _
  // Predicated region
  $region18: #{_forward_tiled.1} parent=0 // pred_check
    _
  $region19: #{_forward_tiled.1} parent=0 // pred_check_branch
    %21 = sbr.rel (0) target = $region21
  $region20: #{_forward_tiled.1} parent=0 // pred_region
    _
  $region21: #{_forward_tiled.1} parent=0 // pred_fallthru
    _
  // Predicated region
  $region22: #{_forward_tiled.1} parent=0 // pred_check
    _
  $region23: #{_forward_tiled.1} parent=0 // pred_check_branch
    %23 = sbr.rel (0) target = $region25
  $region24: #{_forward_tiled.1} parent=0 // pred_region
    _
  $region25: #{_forward_tiled.1} parent=0 // pred_fallthru
    _
  // Predicated region
  $region26: #{_forward_tiled.1} parent=0 // pred_check
    _
  $region27: #{_forward_tiled.1} parent=0 // pred_check_branch
    %25 = sbr.rel (0) target = $region29
  $region28: #{_forward_tiled.1} parent=0 // pred_region
    _
  $region29: #{_forward_tiled.1} parent=0 // pred_fallthru
    _
  %v27 = vld [vmem:[%s0] sm:$0xff]
  %v28 = vld [vmem:[%s0 + $0x8] sm:$0xff]
  %v29 = vld [vmem:[%s0 + $0x10] sm:$0xff]
  %v30 = vld [vmem:[%s0 + $0x18] sm:$0xff]
  %v31 = vld [vmem:[%s0 + $0x20] sm:$0xff]
  %v32 = vld [vmem:[%s0 + $0x28] sm:$0xff]
  %v33 = vld [vmem:[%s0 + $0x30] sm:$0xff]
  %v34 = vld [vmem:[%s0 + $0x38] sm:$0xff]
  %v35 = vld [vmem:[%s0 + $0x40] sm:$0xff]
  %v36 = vld [vmem:[%s0 + $0x48] sm:$0xff]
  %v37 = vld [vmem:[%s0 + $0x50] sm:$0xff]
  %v38 = vld [vmem:[%s0 + $0x58] sm:$0xff]
  %v39 = vld [vmem:[%s0 + $0x60] sm:$0xff]
  %v40 = vld [vmem:[%s0 + $0x68] sm:$0xff]
  %v41 = vld [vmem:[%s0 + $0x70] sm:$0xff]
  %v42 = vld [vmem:[%s0 + $0x78] sm:$0xff]
  %v43 = vld [vmem:[%s0 + $0x80] sm:$0xff]
  %v44 = vld [vmem:[%s0 + $0x88] sm:$0xff]
  %v45 = vld [vmem:[%s0 + $0x90] sm:$0xff]
  %v46 = vld [vmem:[%s0 + $0x98] sm:$0xff]
  %v47 = vld [vmem:[%s0 + $0xa0] sm:$0xff]
  %v48 = vld [vmem:[%s0 + $0xa8] sm:$0xff]
  %v49 = vld [vmem:[%s0 + $0xb0] sm:$0xff]
  %v50 = vld [vmem:[%s0 + $0xb8] sm:$0xff]
  %v51 = vld [vmem:[%s0 + $0xc0] sm:$0xff]
  %v52 = vld [vmem:[%s0 + $0xc8] sm:$0xff]
  %v53 = vld [vmem:[%s0 + $0xd0] sm:$0xff]
  %v54 = vld [vmem:[%s0 + $0xd8] sm:$0xff]
  %v55 = vld [vmem:[%s0 + $0xe0] sm:$0xff]
  %v56 = vld [vmem:[%s0 + $0xe8] sm:$0xff]
  %v57 = vld [vmem:[%s0 + $0xf0] sm:$0xff]
  %v58 = vld [vmem:[%s0 + $0xf8] sm:$0xff]
  %v59 = vpack.c.bf16 %v28, %v27
  %v60 = vpack.c.bf16 %v30, %v29
  %v61 = vpack.c.bf16 %v32, %v31
  %v62 = vpack.c.bf16 %v34, %v33
  %v63 = vpack.c.bf16 %v36, %v35
  %v64 = vpack.c.bf16 %v38, %v37
  %v65 = vpack.c.bf16 %v40, %v39
  %v66 = vpack.c.bf16 %v42, %v41
  %v67 = vpack.c.bf16 %v44, %v43
  %v68 = vpack.c.bf16 %v46, %v45
  %v69 = vpack.c.bf16 %v48, %v47
  %v70 = vpack.c.bf16 %v50, %v49
  %v71 = vpack.c.bf16 %v52, %v51
  %v72 = vpack.c.bf16 %v54, %v53
  %v73 = vpack.c.bf16 %v56, %v55
  %v74 = vpack.c.bf16 %v58, %v57
  %v75 = vld [vmem:[%s1] sm:$0xf]
  %v76 = vld [vmem:[%s1 + $0x4] sm:$0xf]
  %v77 = vld [vmem:[%s1 + $0x8] sm:$0xf]
  %v78 = vld [vmem:[%s1 + $0xc] sm:$0xf]
  %v79 = vld [vmem:[%s2] sm:$0x1]
  %v81 = vperm.slane %v79, 0
  %v87 = vunpack.c.l.b16 %v75
  %v88 = vunpack.c.l.b16 %v76
  %v89 = vunpack.c.l.b16 %v77
  %v90 = vunpack.c.l.b16 %v78
  %v91 = vpack.c.b16 %v88, %v87
  %v92 = vpack.c.b16 %v90, %v89
  %vm95 = vcmask 261120
  %v97 = vsel %vm95, %v59, 0
  %v100 = vsel %vm95, %v60, 0
  %v103 = vsel %vm95, %v61, 0
  %v106 = vsel %vm95, %v62, 0
  %v109 = vsel %vm95, %v63, 0
  %v112 = vsel %vm95, %v64, 0
  %v115 = vsel %vm95, %v65, 0
  %v118 = vsel %vm95, %v66, 0
  %v121 = vsel %vm95, %v67, 0
  %v124 = vsel %vm95, %v68, 0
  %v127 = vsel %vm95, %v69, 0
  %v130 = vsel %vm95, %v70, 0
  %v133 = vsel %vm95, %v71, 0
  %v136 = vsel %vm95, %v72, 0
  %v139 = vsel %vm95, %v73, 0
  %v142 = vsel %vm95, %v74, 0
  %144 = vmatpush.bf16.msra.mxu0 0
  %145 = vmatpush.bf16.msra.mxu0 0
  %146 = vmatpush.bf16.msra.mxu0 0
  %147 = vmatpush.bf16.msra.mxu0 0
  %148 = vmatpush.bf16.msra.mxu0 0
  %149 = vmatpush.bf16.msra.mxu0 0
  %150 = vmatpush.bf16.msra.mxu0 %v92
  %151 = vmatpush.bf16.msra.mxu0 %v91
  %152 = vmatmul.bf16.gmra.mxu0 %v97
  %v153 = vpop.f32.mrf.mxu0
  %v154 = vadd.f32 %v81, %v153
  %v155 = vpop.f32.mrf.mxu0
  %v156 = vadd.f32 %v81, %v155
  %157 = vmatmul.bf16.gmra.mxu0 %v100
  %v158 = vpop.f32.mrf.mxu0
  %v159 = vadd.f32 %v81, %v158
  %v160 = vpop.f32.mrf.mxu0
  %v161 = vadd.f32 %v81, %v160
  %162 = vmatmul.bf16.gmra.mxu0 %v103
  %v163 = vpop.f32.mrf.mxu0
  %v164 = vadd.f32 %v81, %v163
  %v165 = vpop.f32.mrf.mxu0
  %v166 = vadd.f32 %v81, %v165
  %167 = vmatmul.bf16.gmra.mxu0 %v106
  %v168 = vpop.f32.mrf.mxu0
  %v169 = vadd.f32 %v81, %v168
  %v170 = vpop.f32.mrf.mxu0
  %v171 = vadd.f32 %v81, %v170
  %172 = vmatmul.bf16.gmra.mxu0 %v109
  %v173 = vpop.f32.mrf.mxu0
  %v174 = vadd.f32 %v81, %v173
  %v175 = vpop.f32.mrf.mxu0
  %v176 = vadd.f32 %v81, %v175
  %177 = vmatmul.bf16.gmra.mxu0 %v112
  %v178 = vpop.f32.mrf.mxu0
  %v179 = vadd.f32 %v81, %v178
  %v180 = vpop.f32.mrf.mxu0
  %v181 = vadd.f32 %v81, %v180
  %182 = vmatmul.bf16.gmra.mxu0 %v115
  %v183 = vpop.f32.mrf.mxu0
  %v184 = vadd.f32 %v81, %v183
  %v185 = vpop.f32.mrf.mxu0
  %v186 = vadd.f32 %v81, %v185
  %187 = vmatmul.bf16.gmra.mxu0 %v118
  %v188 = vpop.f32.mrf.mxu0
  %v189 = vadd.f32 %v81, %v188
  %v190 = vpop.f32.mrf.mxu0
  %v191 = vadd.f32 %v81, %v190
  %192 = vmatmul.bf16.gmra.mxu0 %v121
  %v193 = vpop.f32.mrf.mxu0
  %v194 = vadd.f32 %v81, %v193
  %v195 = vpop.f32.mrf.mxu0
  %v196 = vadd.f32 %v81, %v195
  %197 = vmatmul.bf16.gmra.mxu0 %v124
  %v198 = vpop.f32.mrf.mxu0
  %v199 = vadd.f32 %v81, %v198
  %v200 = vpop.f32.mrf.mxu0
  %v201 = vadd.f32 %v81, %v200
  %202 = vmatmul.bf16.gmra.mxu0 %v127
  %v203 = vpop.f32.mrf.mxu0
  %v204 = vadd.f32 %v81, %v203
  %v205 = vpop.f32.mrf.mxu0
  %v206 = vadd.f32 %v81, %v205
  %207 = vmatmul.bf16.gmra.mxu0 %v130
  %v208 = vpop.f32.mrf.mxu0
  %v209 = vadd.f32 %v81, %v208
  %v210 = vpop.f32.mrf.mxu0
  %v211 = vadd.f32 %v81, %v210
  %212 = vmatmul.bf16.gmra.mxu0 %v133
  %v213 = vpop.f32.mrf.mxu0
  %v214 = vadd.f32 %v81, %v213
  %v215 = vpop.f32.mrf.mxu0
  %v216 = vadd.f32 %v81, %v215
  %217 = vmatmul.bf16.gmra.mxu0 %v136
  %v218 = vpop.f32.mrf.mxu0
  %v219 = vadd.f32 %v81, %v218
  %v220 = vpop.f32.mrf.mxu0
  %v221 = vadd.f32 %v81, %v220
  %222 = vmatmul.bf16.gmra.mxu0 %v139
  %v223 = vpop.f32.mrf.mxu0
  %v224 = vadd.f32 %v81, %v223
  %v225 = vpop.f32.mrf.mxu0
  %v226 = vadd.f32 %v81, %v225
  %227 = vmatmul.bf16.gmra.mxu0 %v142
  %v228 = vpop.f32.mrf.mxu0
  %v229 = vadd.f32 %v81, %v228
  %v230 = vpop.f32.mrf.mxu0
  %v231 = vadd.f32 %v81, %v230
  %232 = vdwg.mxu0
  %v233 = vmul.f32 %v154, 0.01
  %v234 = vmul.f32 %v156, 0.01
  %v235 = vmul.f32 %v159, 0.01
  %v236 = vmul.f32 %v161, 0.01
  %v237 = vmul.f32 %v164, 0.01
  %v238 = vmul.f32 %v166, 0.01
  %v239 = vmul.f32 %v169, 0.01
  %v240 = vmul.f32 %v171, 0.01
  %v241 = vmul.f32 %v174, 0.01
  %v242 = vmul.f32 %v176, 0.01
  %v243 = vmul.f32 %v179, 0.01
  %v244 = vmul.f32 %v181, 0.01
  %v245 = vmul.f32 %v184, 0.01
  %v246 = vmul.f32 %v186, 0.01
  %v247 = vmul.f32 %v189, 0.01
  %v248 = vmul.f32 %v191, 0.01
  %v249 = vmul.f32 %v194, 0.01
  %v250 = vmul.f32 %v196, 0.01
  %v251 = vmul.f32 %v199, 0.01
  %v252 = vmul.f32 %v201, 0.01
  %v253 = vmul.f32 %v204, 0.01
  %v254 = vmul.f32 %v206, 0.01
  %v255 = vmul.f32 %v209, 0.01
  %v256 = vmul.f32 %v211, 0.01
  %v257 = vmul.f32 %v214, 0.01
  %v258 = vmul.f32 %v216, 0.01
  %v259 = vmul.f32 %v219, 0.01
  %v260 = vmul.f32 %v221, 0.01
  %v261 = vmul.f32 %v224, 0.01
  %v262 = vmul.f32 %v226, 0.01
  %v263 = vmul.f32 %v229, 0.01
  %v264 = vmul.f32 %v231, 0.01
  %v265 = vmax.f32 %v154, %v233
  %v266 = vmax.f32 %v156, %v234
  %v267 = vmax.f32 %v159, %v235
  %v268 = vmax.f32 %v161, %v236
  %v269 = vmax.f32 %v164, %v237
  %v270 = vmax.f32 %v166, %v238
  %v271 = vmax.f32 %v169, %v239
  %v272 = vmax.f32 %v171, %v240
  %v273 = vmax.f32 %v174, %v241
  %v274 = vmax.f32 %v176, %v242
  %v275 = vmax.f32 %v179, %v243
  %v276 = vmax.f32 %v181, %v244
  %v277 = vmax.f32 %v184, %v245
  %v278 = vmax.f32 %v186, %v246
  %v279 = vmax.f32 %v189, %v247
  %v280 = vmax.f32 %v191, %v248
  %v281 = vmax.f32 %v194, %v249
  %v282 = vmax.f32 %v196, %v250
  %v283 = vmax.f32 %v199, %v251
  %v284 = vmax.f32 %v201, %v252
  %v285 = vmax.f32 %v204, %v253
  %v286 = vmax.f32 %v206, %v254
  %v287 = vmax.f32 %v209, %v255
  %v288 = vmax.f32 %v211, %v256
  %v289 = vmax.f32 %v214, %v257
  %v290 = vmax.f32 %v216, %v258
  %v291 = vmax.f32 %v219, %v259
  %v292 = vmax.f32 %v221, %v260
  %v293 = vmax.f32 %v224, %v261
  %v294 = vmax.f32 %v226, %v262
  %v295 = vmax.f32 %v229, %v263
  %v296 = vmax.f32 %v231, %v264
  %v297 = vpack.c.bf16 %v266, %v265
  %v298 = vpack.c.bf16 %v268, %v267
  %v299 = vpack.c.bf16 %v270, %v269
  %v300 = vpack.c.bf16 %v272, %v271
  %v301 = vpack.c.bf16 %v274, %v273
  %v302 = vpack.c.bf16 %v276, %v275
  %v303 = vpack.c.bf16 %v278, %v277
  %v304 = vpack.c.bf16 %v280, %v279
  %v305 = vpack.c.bf16 %v282, %v281
  %v306 = vpack.c.bf16 %v284, %v283
  %v307 = vpack.c.bf16 %v286, %v285
  %v308 = vpack.c.bf16 %v288, %v287
  %v309 = vpack.c.bf16 %v290, %v289
  %v310 = vpack.c.bf16 %v292, %v291
  %v311 = vpack.c.bf16 %v294, %v293
  %v312 = vpack.c.bf16 %v296, %v295
  %v313 = vld [vmem:[%s3] sm:$0xf]
  %v314 = vld [vmem:[%s3 + $0x4] sm:$0xf]
  %v315 = vld [vmem:[%s3 + $0x8] sm:$0xf]
  %v316 = vld [vmem:[%s3 + $0xc] sm:$0xf]
  %v317 = vld [vmem:[%s3 + $0x10] sm:$0xf]
  %v318 = vld [vmem:[%s3 + $0x14] sm:$0xf]
  %v319 = vld [vmem:[%s3 + $0x18] sm:$0xf]
  %v320 = vld [vmem:[%s3 + $0x1c] sm:$0xf]
  %v321 = vld [vmem:[%s3 + $0x20] sm:$0xf]
  %v322 = vld [vmem:[%s3 + $0x24] sm:$0xf]
  %v323 = vld [vmem:[%s3 + $0x28] sm:$0xf]
  %v324 = vld [vmem:[%s3 + $0x2c] sm:$0xf]
  %v325 = vld [vmem:[%s3 + $0x30] sm:$0xf]
  %v326 = vld [vmem:[%s3 + $0x34] sm:$0xf]
  %v327 = vld [vmem:[%s3 + $0x38] sm:$0xf]
  %v328 = vld [vmem:[%s3 + $0x3c] sm:$0xf]
  %v329 = vld [vmem:[%s4] sm:$0x1]
  %v331 = vperm.slane %v329, 0
  %v349 = vunpack.c.l.b16 %v313
  %v350 = vunpack.c.l.b16 %v314
  %v351 = vunpack.c.l.b16 %v315
  %v352 = vunpack.c.l.b16 %v316
  %v353 = vunpack.c.l.b16 %v317
  %v354 = vunpack.c.l.b16 %v318
  %v355 = vunpack.c.l.b16 %v319
  %v356 = vunpack.c.l.b16 %v320
  %v357 = vunpack.c.l.b16 %v321
  %v358 = vunpack.c.l.b16 %v322
  %v359 = vunpack.c.l.b16 %v323
  %v360 = vunpack.c.l.b16 %v324
  %v361 = vunpack.c.l.b16 %v325
  %v362 = vunpack.c.l.b16 %v326
  %v363 = vunpack.c.l.b16 %v327
  %v364 = vunpack.c.l.b16 %v328
  %v365 = vpack.c.b16 %v350, %v349
  %v366 = vpack.c.b16 %v352, %v351
  %v367 = vpack.c.b16 %v354, %v353
  %v368 = vpack.c.b16 %v356, %v355
  %v369 = vpack.c.b16 %v358, %v357
  %v370 = vpack.c.b16 %v360, %v359
  %v371 = vpack.c.b16 %v362, %v361
  %v372 = vpack.c.b16 %v364, %v363
  %381 = vmatpush.bf16.msra.mxu0 %v372
  %382 = vmatpush.bf16.msra.mxu0 %v371
  %383 = vmatpush.bf16.msra.mxu0 %v370
  %384 = vmatpush.bf16.msra.mxu0 %v369
  %385 = vmatpush.bf16.msra.mxu0 %v368
  %386 = vmatpush.bf16.msra.mxu0 %v367
  %387 = vmatpush.bf16.msra.mxu0 %v366
  %388 = vmatpush.bf16.msra.mxu0 %v365
  %389 = vmatmul.bf16.gmra.mxu0 %v297
  %v390 = vpop.f32.mrf.mxu0
  %v391 = vadd.f32 %v331, %v390
  %v392 = vpop.f32.mrf.mxu0
  %v393 = vadd.f32 %v331, %v392
  %394 = vmatmul.bf16.gmra.mxu0 %v298
  %v395 = vpop.f32.mrf.mxu0
  %v396 = vadd.f32 %v331, %v395
  %v397 = vpop.f32.mrf.mxu0
  %v398 = vadd.f32 %v331, %v397
  %399 = vmatmul.bf16.gmra.mxu0 %v299
  %v400 = vpop.f32.mrf.mxu0
  %v401 = vadd.f32 %v331, %v400
  %v402 = vpop.f32.mrf.mxu0
  %v403 = vadd.f32 %v331, %v402
  %404 = vmatmul.bf16.gmra.mxu0 %v300
  %v405 = vpop.f32.mrf.mxu0
  %v406 = vadd.f32 %v331, %v405
  %v407 = vpop.f32.mrf.mxu0
  %v408 = vadd.f32 %v331, %v407
  %409 = vmatmul.bf16.gmra.mxu0 %v301
  %v410 = vpop.f32.mrf.mxu0
  %v411 = vadd.f32 %v331, %v410
  %v412 = vpop.f32.mrf.mxu0
  %v413 = vadd.f32 %v331, %v412
  %414 = vmatmul.bf16.gmra.mxu0 %v302
  %v415 = vpop.f32.mrf.mxu0
  %v416 = vadd.f32 %v331, %v415
  %v417 = vpop.f32.mrf.mxu0
  %v418 = vadd.f32 %v331, %v417
  %419 = vmatmul.bf16.gmra.mxu0 %v303
  %v420 = vpop.f32.mrf.mxu0
  %v421 = vadd.f32 %v331, %v420
  %v422 = vpop.f32.mrf.mxu0
  %v423 = vadd.f32 %v331, %v422
  %424 = vmatmul.bf16.gmra.mxu0 %v304
  %v425 = vpop.f32.mrf.mxu0
  %v426 = vadd.f32 %v331, %v425
  %v427 = vpop.f32.mrf.mxu0
  %v428 = vadd.f32 %v331, %v427
  %429 = vmatmul.bf16.gmra.mxu0 %v305
  %v430 = vpop.f32.mrf.mxu0
  %v431 = vadd.f32 %v331, %v430
  %v432 = vpop.f32.mrf.mxu0
  %v433 = vadd.f32 %v331, %v432
  %434 = vmatmul.bf16.gmra.mxu0 %v306
  %v435 = vpop.f32.mrf.mxu0
  %v436 = vadd.f32 %v331, %v435
  %v437 = vpop.f32.mrf.mxu0
  %v438 = vadd.f32 %v331, %v437
  %439 = vmatmul.bf16.gmra.mxu0 %v307
  %v440 = vpop.f32.mrf.mxu0
  %v441 = vadd.f32 %v331, %v440
  %v442 = vpop.f32.mrf.mxu0
  %v443 = vadd.f32 %v331, %v442
  %444 = vmatmul.bf16.gmra.mxu0 %v308
  %v445 = vpop.f32.mrf.mxu0
  %v446 = vadd.f32 %v331, %v445
  %v447 = vpop.f32.mrf.mxu0
  %v448 = vadd.f32 %v331, %v447
  %449 = vmatmul.bf16.gmra.mxu0 %v309
  %v450 = vpop.f32.mrf.mxu0
  %v451 = vadd.f32 %v331, %v450
  %v452 = vpop.f32.mrf.mxu0
  %v453 = vadd.f32 %v331, %v452
  %454 = vmatmul.bf16.gmra.mxu0 %v310
  %v455 = vpop.f32.mrf.mxu0
  %v456 = vadd.f32 %v331, %v455
  %v457 = vpop.f32.mrf.mxu0
  %v458 = vadd.f32 %v331, %v457
  %459 = vmatmul.bf16.gmra.mxu0 %v311
  %v460 = vpop.f32.mrf.mxu0
  %v461 = vadd.f32 %v331, %v460
  %v462 = vpop.f32.mrf.mxu0
  %v463 = vadd.f32 %v331, %v462
  %464 = vmatmul.bf16.gmra.mxu0 %v312
  %v465 = vpop.f32.mrf.mxu0
  %v466 = vadd.f32 %v331, %v465
  %v467 = vpop.f32.mrf.mxu0
  %v468 = vadd.f32 %v331, %v467
  %469 = vdwg.mxu0
  %v470 = vmul.f32 %v391, 0.01
  %v471 = vmul.f32 %v393, 0.01
  %v472 = vmul.f32 %v396, 0.01
  %v473 = vmul.f32 %v398, 0.01
  %v474 = vmul.f32 %v401, 0.01
  %v475 = vmul.f32 %v403, 0.01
  %v476 = vmul.f32 %v406, 0.01
  %v477 = vmul.f32 %v408, 0.01
  %v478 = vmul.f32 %v411, 0.01
  %v479 = vmul.f32 %v413, 0.01
  %v480 = vmul.f32 %v416, 0.01
  %v481 = vmul.f32 %v418, 0.01
  %v482 = vmul.f32 %v421, 0.01
  %v483 = vmul.f32 %v423, 0.01
  %v484 = vmul.f32 %v426, 0.01
  %v485 = vmul.f32 %v428, 0.01
  %v486 = vmul.f32 %v431, 0.01
  %v487 = vmul.f32 %v433, 0.01
  %v488 = vmul.f32 %v436, 0.01
  %v489 = vmul.f32 %v438, 0.01
  %v490 = vmul.f32 %v441, 0.01
  %v491 = vmul.f32 %v443, 0.01
  %v492 = vmul.f32 %v446, 0.01
  %v493 = vmul.f32 %v448, 0.01
  %v494 = vmul.f32 %v451, 0.01
  %v495 = vmul.f32 %v453, 0.01
  %v496 = vmul.f32 %v456, 0.01
  %v497 = vmul.f32 %v458, 0.01
  %v498 = vmul.f32 %v461, 0.01
  %v499 = vmul.f32 %v463, 0.01
  %v500 = vmul.f32 %v466, 0.01
  %v501 = vmul.f32 %v468, 0.01
  %v502 = vmax.f32 %v391, %v470
  %v503 = vmax.f32 %v393, %v471
  %v504 = vmax.f32 %v396, %v472
  %v505 = vmax.f32 %v398, %v473
  %v506 = vmax.f32 %v401, %v474
  %v507 = vmax.f32 %v403, %v475
  %v508 = vmax.f32 %v406, %v476
  %v509 = vmax.f32 %v408, %v477
  %v510 = vmax.f32 %v411, %v478
  %v511 = vmax.f32 %v413, %v479
  %v512 = vmax.f32 %v416, %v480
  %v513 = vmax.f32 %v418, %v481
  %v514 = vmax.f32 %v421, %v482
  %v515 = vmax.f32 %v423, %v483
  %v516 = vmax.f32 %v426, %v484
  %v517 = vmax.f32 %v428, %v485
  %v518 = vmax.f32 %v431, %v486
  %v519 = vmax.f32 %v433, %v487
  %v520 = vmax.f32 %v436, %v488
  %v521 = vmax.f32 %v438, %v489
  %v522 = vmax.f32 %v441, %v490
  %v523 = vmax.f32 %v443, %v491
  %v524 = vmax.f32 %v446, %v492
  %v525 = vmax.f32 %v448, %v493
  %v526 = vmax.f32 %v451, %v494
  %v527 = vmax.f32 %v453, %v495
  %v528 = vmax.f32 %v456, %v496
  %v529 = vmax.f32 %v458, %v497
  %v530 = vmax.f32 %v461, %v498
  %v531 = vmax.f32 %v463, %v499
  %v532 = vmax.f32 %v466, %v500
  %v533 = vmax.f32 %v468, %v501
  %v534 = vpack.c.bf16 %v503, %v502
  %v535 = vpack.c.bf16 %v505, %v504
  %v536 = vpack.c.bf16 %v507, %v506
  %v537 = vpack.c.bf16 %v509, %v508
  %v538 = vpack.c.bf16 %v511, %v510
  %v539 = vpack.c.bf16 %v513, %v512
  %v540 = vpack.c.bf16 %v515, %v514
  %v541 = vpack.c.bf16 %v517, %v516
  %v542 = vpack.c.bf16 %v519, %v518
  %v543 = vpack.c.bf16 %v521, %v520
  %v544 = vpack.c.bf16 %v523, %v522
  %v545 = vpack.c.bf16 %v525, %v524
  %v546 = vpack.c.bf16 %v527, %v526
  %v547 = vpack.c.bf16 %v529, %v528
  %v548 = vpack.c.bf16 %v531, %v530
  %v549 = vpack.c.bf16 %v533, %v532
  %v550 = vld [vmem:[%s5] sm:$0xf]
  %v551 = vld [vmem:[%s5 + $0x4] sm:$0xf]
  %v552 = vld [vmem:[%s5 + $0x8] sm:$0xf]
  %v553 = vld [vmem:[%s5 + $0xc] sm:$0xf]
  %v554 = vld [vmem:[%s5 + $0x10] sm:$0xf]
  %v555 = vld [vmem:[%s5 + $0x14] sm:$0xf]
  %v556 = vld [vmem:[%s5 + $0x18] sm:$0xf]
  %v557 = vld [vmem:[%s5 + $0x1c] sm:$0xf]
  %v558 = vld [vmem:[%s5 + $0x20] sm:$0xf]
  %v559 = vld [vmem:[%s5 + $0x24] sm:$0xf]
  %v560 = vld [vmem:[%s5 + $0x28] sm:$0xf]
  %v561 = vld [vmem:[%s5 + $0x2c] sm:$0xf]
  %v562 = vld [vmem:[%s5 + $0x30] sm:$0xf]
  %v563 = vld [vmem:[%s5 + $0x34] sm:$0xf]
  %v564 = vld [vmem:[%s5 + $0x38] sm:$0xf]
  %v565 = vld [vmem:[%s5 + $0x3c] sm:$0xf]
  %v566 = vld [vmem:[%s6] sm:$0x1]
  %v568 = vperm.slane %v566, 0
  %v586 = vunpack.c.l.b16 %v550
  %v587 = vunpack.c.l.b16 %v551
  %v588 = vunpack.c.l.b16 %v552
  %v589 = vunpack.c.l.b16 %v553
  %v590 = vunpack.c.l.b16 %v554
  %v591 = vunpack.c.l.b16 %v555
  %v592 = vunpack.c.l.b16 %v556
  %v593 = vunpack.c.l.b16 %v557
  %v594 = vunpack.c.l.b16 %v558
  %v595 = vunpack.c.l.b16 %v559
  %v596 = vunpack.c.l.b16 %v560
  %v597 = vunpack.c.l.b16 %v561
  %v598 = vunpack.c.l.b16 %v562
  %v599 = vunpack.c.l.b16 %v563
  %v600 = vunpack.c.l.b16 %v564
  %v601 = vunpack.c.l.b16 %v565
  %v602 = vpack.c.b16 %v587, %v586
  %v603 = vpack.c.b16 %v589, %v588
  %v604 = vpack.c.b16 %v591, %v590
  %v605 = vpack.c.b16 %v593, %v592
  %v606 = vpack.c.b16 %v595, %v594
  %v607 = vpack.c.b16 %v597, %v596
  %v608 = vpack.c.b16 %v599, %v598
  %v609 = vpack.c.b16 %v601, %v600
  %618 = vmatpush.bf16.msra.mxu0 %v609
  %619 = vmatpush.bf16.msra.mxu0 %v608
  %620 = vmatpush.bf16.msra.mxu0 %v607
  %621 = vmatpush.bf16.msra.mxu0 %v606
  %622 = vmatpush.bf16.msra.mxu0 %v605
  %623 = vmatpush.bf16.msra.mxu0 %v604
  %624 = vmatpush.bf16.msra.mxu0 %v603
  %625 = vmatpush.bf16.msra.mxu0 %v602
  %626 = vmatmul.bf16.gmra.mxu0 %v534
  %v627 = vpop.f32.mrf.mxu0
  %v628 = vadd.f32 %v568, %v627
  %v629 = vpop.f32.mrf.mxu0
  %v630 = vadd.f32 %v568, %v629
  %631 = vmatmul.bf16.gmra.mxu0 %v535
  %v632 = vpop.f32.mrf.mxu0
  %v633 = vadd.f32 %v568, %v632
  %v634 = vpop.f32.mrf.mxu0
  %v635 = vadd.f32 %v568, %v634
  %636 = vmatmul.bf16.gmra.mxu0 %v536
  %v637 = vpop.f32.mrf.mxu0
  %v638 = vadd.f32 %v568, %v637
  %v639 = vpop.f32.mrf.mxu0
  %v640 = vadd.f32 %v568, %v639
  %641 = vmatmul.bf16.gmra.mxu0 %v537
  %v642 = vpop.f32.mrf.mxu0
  %v643 = vadd.f32 %v568, %v642
  %v644 = vpop.f32.mrf.mxu0
  %v645 = vadd.f32 %v568, %v644
  %646 = vmatmul.bf16.gmra.mxu0 %v538
  %v647 = vpop.f32.mrf.mxu0
  %v648 = vadd.f32 %v568, %v647
  %v649 = vpop.f32.mrf.mxu0
  %v650 = vadd.f32 %v568, %v649
  %651 = vmatmul.bf16.gmra.mxu0 %v539
  %v652 = vpop.f32.mrf.mxu0
  %v653 = vadd.f32 %v568, %v652
  %v654 = vpop.f32.mrf.mxu0
  %v655 = vadd.f32 %v568, %v654
  %656 = vmatmul.bf16.gmra.mxu0 %v540
  %v657 = vpop.f32.mrf.mxu0
  %v658 = vadd.f32 %v568, %v657
  %v659 = vpop.f32.mrf.mxu0
  %v660 = vadd.f32 %v568, %v659
  %661 = vmatmul.bf16.gmra.mxu0 %v541
  %v662 = vpop.f32.mrf.mxu0
  %v663 = vadd.f32 %v568, %v662
  %v664 = vpop.f32.mrf.mxu0
  %v665 = vadd.f32 %v568, %v664
  %666 = vmatmul.bf16.gmra.mxu0 %v542
  %v667 = vpop.f32.mrf.mxu0
  %v668 = vadd.f32 %v568, %v667
  %v669 = vpop.f32.mrf.mxu0
  %v670 = vadd.f32 %v568, %v669
  %671 = vmatmul.bf16.gmra.mxu0 %v543
  %v672 = vpop.f32.mrf.mxu0
  %v673 = vadd.f32 %v568, %v672
  %v674 = vpop.f32.mrf.mxu0
  %v675 = vadd.f32 %v568, %v674
  %676 = vmatmul.bf16.gmra.mxu0 %v544
  %v677 = vpop.f32.mrf.mxu0
  %v678 = vadd.f32 %v568, %v677
  %v679 = vpop.f32.mrf.mxu0
  %v680 = vadd.f32 %v568, %v679
  %681 = vmatmul.bf16.gmra.mxu0 %v545
  %v682 = vpop.f32.mrf.mxu0
  %v683 = vadd.f32 %v568, %v682
  %v684 = vpop.f32.mrf.mxu0
  %v685 = vadd.f32 %v568, %v684
  %686 = vmatmul.bf16.gmra.mxu0 %v546
  %v687 = vpop.f32.mrf.mxu0
  %v688 = vadd.f32 %v568, %v687
  %v689 = vpop.f32.mrf.mxu0
  %v690 = vadd.f32 %v568, %v689
  %691 = vmatmul.bf16.gmra.mxu0 %v547
  %v692 = vpop.f32.mrf.mxu0
  %v693 = vadd.f32 %v568, %v692
  %v694 = vpop.f32.mrf.mxu0
  %v695 = vadd.f32 %v568, %v694
  %696 = vmatmul.bf16.gmra.mxu0 %v548
  %v697 = vpop.f32.mrf.mxu0
  %v698 = vadd.f32 %v568, %v697
  %v699 = vpop.f32.mrf.mxu0
  %v700 = vadd.f32 %v568, %v699
  %701 = vmatmul.bf16.gmra.mxu0 %v549
  %v702 = vpop.f32.mrf.mxu0
  %v703 = vadd.f32 %v568, %v702
  %v704 = vpop.f32.mrf.mxu0
  %v705 = vadd.f32 %v568, %v704
  %706 = vdwg.mxu0
  %707 = vst.msk [vmem:[%s7] sm:$0xff] %vm95, %v628
  %708 = vst.msk [vmem:[%s7 + $0x8] sm:$0xff] %vm95, %v630
  %709 = vst.msk [vmem:[%s7 + $0x10] sm:$0xff] %vm95, %v633
  %710 = vst.msk [vmem:[%s7 + $0x18] sm:$0xff] %vm95, %v635
  %711 = vst.msk [vmem:[%s7 + $0x20] sm:$0xff] %vm95, %v638
  %712 = vst.msk [vmem:[%s7 + $0x28] sm:$0xff] %vm95, %v640
  %713 = vst.msk [vmem:[%s7 + $0x30] sm:$0xff] %vm95, %v643
  %714 = vst.msk [vmem:[%s7 + $0x38] sm:$0xff] %vm95, %v645
  %715 = vst.msk [vmem:[%s7 + $0x40] sm:$0xff] %vm95, %v648
  %716 = vst.msk [vmem:[%s7 + $0x48] sm:$0xff] %vm95, %v650
  %717 = vst.msk [vmem:[%s7 + $0x50] sm:$0xff] %vm95, %v653
  %718 = vst.msk [vmem:[%s7 + $0x58] sm:$0xff] %vm95, %v655
  %719 = vst.msk [vmem:[%s7 + $0x60] sm:$0xff] %vm95, %v658
  %720 = vst.msk [vmem:[%s7 + $0x68] sm:$0xff] %vm95, %v660
  %721 = vst.msk [vmem:[%s7 + $0x70] sm:$0xff] %vm95, %v663
  %722 = vst.msk [vmem:[%s7 + $0x78] sm:$0xff] %vm95, %v665
  %723 = vst.msk [vmem:[%s7 + $0x80] sm:$0xff] %vm95, %v668
  %724 = vst.msk [vmem:[%s7 + $0x88] sm:$0xff] %vm95, %v670
  %725 = vst.msk [vmem:[%s7 + $0x90] sm:$0xff] %vm95, %v673
  %726 = vst.msk [vmem:[%s7 + $0x98] sm:$0xff] %vm95, %v675
  %727 = vst.msk [vmem:[%s7 + $0xa0] sm:$0xff] %vm95, %v678
  %728 = vst.msk [vmem:[%s7 + $0xa8] sm:$0xff] %vm95, %v680
  %729 = vst.msk [vmem:[%s7 + $0xb0] sm:$0xff] %vm95, %v683
  %730 = vst.msk [vmem:[%s7 + $0xb8] sm:$0xff] %vm95, %v685
  %731 = vst.msk [vmem:[%s7 + $0xc0] sm:$0xff] %vm95, %v688
  %732 = vst.msk [vmem:[%s7 + $0xc8] sm:$0xff] %vm95, %v690
  %733 = vst.msk [vmem:[%s7 + $0xd0] sm:$0xff] %vm95, %v693
  %734 = vst.msk [vmem:[%s7 + $0xd8] sm:$0xff] %vm95, %v695
  %735 = vst.msk [vmem:[%s7 + $0xe0] sm:$0xff] %vm95, %v698
  %736 = vst.msk [vmem:[%s7 + $0xe8] sm:$0xff] %vm95, %v700
  %737 = vst.msk [vmem:[%s7 + $0xf0] sm:$0xff] %vm95, %v703
  %738 = vst.msk [vmem:[%s7 + $0xf8] sm:$0xff] %vm95, %v705
  // Predicated region
  $region30: #{_forward_tiled.1} parent=0 // pred_check
    _
  $region31: #{_forward_tiled.1} parent=0 // pred_check_branch
    %740 = sbr.rel (0) target = $region33
  $region32: #{_forward_tiled.1} parent=0 // pred_region
    _
  $region33: #{_forward_tiled.1} parent=0 // pred_fallthru
    _
  // Predicated region
  $region34: #{_forward_tiled.1} parent=0 // pred_check
    _
  $region35: #{_forward_tiled.1} parent=0 // pred_check_branch
    %742 = sbr.rel (0) target = $region37
  $region36: #{_forward_tiled.1} parent=0 // pred_region
    _
  $region37: #{_forward_tiled.1} parent=0 // pred_fallthru
    _

</llo_original>
